<compile_context>
chip_gen: v7x
topology: tpu7x:2x2x1
jax: 0.10.0
libtpu: 0.0.40
codegen_flags: <defaults>
</compile_context>

<pallas_src>
import jax
import jax.numpy as jnp
from jax.experimental import pallas as pl
from jax.experimental.pallas import tpu as pltpu

# Müller-Brown constants (identical to the PyTorch module's __init__).
_A = (-200.0, -100.0, -170.0, 15.0)
_a = (-1.0, -1.0, -6.5, 0.7)
_b = (0.0, 0.0, 11.0, 0.6)
_c = (-10.0, -10.0, -6.5, 0.7)
_X = (1.0, 0.0, -0.5, -1.0)
_Y = (0.0, 0.5, 1.5, 1.0)

_LANES = 128


def _bm_kernel(xy_ref, v_ref):
    # xy_ref: (2, TR, 128) -- plane 0 = x, plane 1 = y. v_ref: (TR, 128).
    x = xy_ref[0]
    y = xy_ref[1]
    v = None
    # 4-term Gaussian sum, unrolled at trace time with dead ops pruned.
    for i in range(4):
        dx = x if _X[i] == 0.0 else x - _X[i]
        dy = y if _Y[i] == 0.0 else y - _Y[i]
        if _b[i] == 0.0:
            expo = (_a[i] * dx) * dx + (_c[i] * dy) * dy
        else:
            expo = (_a[i] * dx) * dx + (_b[i] * dx + _c[i] * dy) * dy
        term = _A[i] * jnp.exp(expo)
        v = term if v is None else v + term
    v_ref[...] = v


def bm_forward(r, block_rows=2048):
    """r: float32 array of shape (N, 2). Returns V of shape (N,).

    block_rows: rows (of 128 lanes) per grid step; 2048 rows -> 2 MiB input
    tile + 1 MiB output tile (~6 MiB double-buffered), comfortably within
    v7x's scoped-VMEM default.
    """
    n = r.shape[0]
    rows_needed = -(-n // _LANES)

    if rows_needed <= block_rows:
        # Single tile: block spans the full (rows, 128) extent (allowed even
        # if rows is not a multiple of 8).
        tr = rows_needed
        rows = rows_needed
    else:
        tr = block_rows
        rows = -(-rows_needed // tr) * tr

    pad = rows * _LANES - n

    # One transpose produces both x and y halves in a single pass; pad the
    # tail with zeros (finite values -> no Inf/NaN; discarded on output).
    xy = jnp.transpose(r).astype(jnp.float32)          # (2, N)
    if pad:
        xy = jnp.pad(xy, ((0, 0), (0, pad)))
    xy = xy.reshape(2, rows, _LANES)                   # lane-dense slab

    v = pl.pallas_call(
        _bm_kernel,
        out_shape=jax.ShapeDtypeStruct((rows, _LANES), jnp.float32),
        grid=(rows // tr,),
        in_specs=[pl.BlockSpec((2, tr, _LANES), lambda i: (0, i, 0))],
        out_specs=pl.BlockSpec((tr, _LANES), lambda i: (i, 0)),
        compiler_params=pltpu.CompilerParams(
            dimension_semantics=("parallel",)),
    )(xy)

    return v.reshape(rows * _LANES)[:n]


def _bm_reference(r):
    """Pure-JAX reference matching the PyTorch forward exactly."""
    x = r[:, 0]
    y = r[:, 1]
    v = jnp.zeros_like(x)
    for i in range(4):
        dx = x - _X[i]
        dy = y - _Y[i]
        v = v + _A[i] * jnp.exp(_a[i] * dx * dx + _b[i] * dx * dy + _c[i] * dy * dy)
    return v


if __name__ == "__main__":
    key = jax.random.PRNGKey(0)

    # --- small test (matches the module's typical usage: a batch of points) ---
    n_small = 8
    kx, ky, kx2, ky2 = jax.random.split(key, 4)
    x = jax.random.uniform(kx, (n_small,), minval=-1.5, maxval=1.1, dtype=jnp.float32)
    y = jax.random.uniform(ky, (n_small,), minval=-0.5, maxval=2.0, dtype=jnp.float32)
    r_small = jnp.stack([x, y], axis=1)                # (8, 2)

    v_small = bm_forward(r_small)
    jax.block_until_ready(v_small)
    v_small_ref = _bm_reference(r_small)
    assert v_small.shape == (n_small,)
    assert jnp.allclose(v_small, v_small_ref, rtol=1e-5, atol=1e-4), (v_small, v_small_ref)

    # --- multi-tile test: exercises the grid, padding, and tail slicing ---
    n_big = 3000
    xb = jax.random.uniform(kx2, (n_big,), minval=-1.5, maxval=1.1, dtype=jnp.float32)
    yb = jax.random.uniform(ky2, (n_big,), minval=-0.5, maxval=2.0, dtype=jnp.float32)
    r_big = jnp.stack([xb, yb], axis=1)                # (3000, 2)

    v_big = bm_forward(r_big, block_rows=8)            # forces a 3-step grid + padding
    jax.block_until_ready(v_big)
    v_big_ref = _bm_reference(r_big)
    assert v_big.shape == (n_big,)
    assert jnp.allclose(v_big, v_big_ref, rtol=1e-5, atol=1e-4)

    print("KERNEL_OK")
</pallas_src>

<mosaic_0001>
module attributes {stable_mosaic.version = 11 : i64} {
  func.func @_bm_kernel(%arg0: i32, %arg1: memref<2x1x128xf32, #tpu.memory_space<vmem>>, %arg2: memref<1x128xf32, #tpu.memory_space<vmem>>) attributes {dimension_semantics = [#tpu.dimension_semantics<parallel>], iteration_bounds = array<i64: 1>, scalar_prefetch = 0 : i64, scratch_operands = 0 : i64, tpu.core_type = #tpu.core_type<tc>, window_params = [{transform_indices = @transform_0, window_bounds = array<i64: 2, 1, 128>}, {transform_indices = @transform_1, window_bounds = array<i64: 1, 128>}]} {
    %c0 = arith.constant 0 : index
    %c0_0 = arith.constant 0 : index
    %c0_1 = arith.constant 0 : index
    %0 = vector.load %arg1[%c0, %c0_0, %c0_1] : memref<2x1x128xf32, #tpu.memory_space<vmem>>, vector<1x1x128xf32>
    %1 = vector.shape_cast %0 : vector<1x1x128xf32> to vector<1x128xf32>
    %c1 = arith.constant 1 : index
    %c0_2 = arith.constant 0 : index
    %c0_3 = arith.constant 0 : index
    %2 = vector.load %arg1[%c1, %c0_2, %c0_3] : memref<2x1x128xf32, #tpu.memory_space<vmem>>, vector<1x1x128xf32>
    %3 = vector.shape_cast %2 : vector<1x1x128xf32> to vector<1x128xf32>
    %cst = arith.constant 1.000000e+00 : f32
    %4 = vector.broadcast %cst : f32 to vector<1x128xf32>
    %5 = arith.subf %1, %4 : vector<1x128xf32>
    %cst_4 = arith.constant -1.000000e+00 : f32
    %6 = vector.broadcast %cst_4 : f32 to vector<1x128xf32>
    %7 = arith.mulf %6, %5 : vector<1x128xf32>
    %8 = arith.mulf %7, %5 : vector<1x128xf32>
    %cst_5 = arith.constant -1.000000e+01 : f32
    %9 = vector.broadcast %cst_5 : f32 to vector<1x128xf32>
    %10 = arith.mulf %9, %3 : vector<1x128xf32>
    %11 = arith.mulf %10, %3 : vector<1x128xf32>
    %12 = arith.addf %8, %11 : vector<1x128xf32>
    %13 = math.exp %12 : vector<1x128xf32>
    %cst_6 = arith.constant -2.000000e+02 : f32
    %14 = vector.broadcast %cst_6 : f32 to vector<1x128xf32>
    %15 = arith.mulf %14, %13 : vector<1x128xf32>
    %cst_7 = arith.constant 5.000000e-01 : f32
    %16 = vector.broadcast %cst_7 : f32 to vector<1x128xf32>
    %17 = arith.subf %3, %16 : vector<1x128xf32>
    %cst_8 = arith.constant -1.000000e+00 : f32
    %18 = vector.broadcast %cst_8 : f32 to vector<1x128xf32>
    %19 = arith.mulf %18, %1 : vector<1x128xf32>
    %20 = arith.mulf %19, %1 : vector<1x128xf32>
    %cst_9 = arith.constant -1.000000e+01 : f32
    %21 = vector.broadcast %cst_9 : f32 to vector<1x128xf32>
    %22 = arith.mulf %21, %17 : vector<1x128xf32>
    %23 = arith.mulf %22, %17 : vector<1x128xf32>
    %24 = arith.addf %20, %23 : vector<1x128xf32>
    %25 = math.exp %24 : vector<1x128xf32>
    %cst_10 = arith.constant -1.000000e+02 : f32
    %26 = vector.broadcast %cst_10 : f32 to vector<1x128xf32>
    %27 = arith.mulf %26, %25 : vector<1x128xf32>
    %28 = arith.addf %15, %27 : vector<1x128xf32>
    %cst_11 = arith.constant -5.000000e-01 : f32
    %29 = vector.broadcast %cst_11 : f32 to vector<1x128xf32>
    %30 = arith.subf %1, %29 : vector<1x128xf32>
    %cst_12 = arith.constant 1.500000e+00 : f32
    %31 = vector.broadcast %cst_12 : f32 to vector<1x128xf32>
    %32 = arith.subf %3, %31 : vector<1x128xf32>
    %cst_13 = arith.constant -6.500000e+00 : f32
    %33 = vector.broadcast %cst_13 : f32 to vector<1x128xf32>
    %34 = arith.mulf %33, %30 : vector<1x128xf32>
    %35 = arith.mulf %34, %30 : vector<1x128xf32>
    %cst_14 = arith.constant 1.100000e+01 : f32
    %36 = vector.broadcast %cst_14 : f32 to vector<1x128xf32>
    %37 = arith.mulf %36, %30 : vector<1x128xf32>
    %cst_15 = arith.constant -6.500000e+00 : f32
    %38 = vector.broadcast %cst_15 : f32 to vector<1x128xf32>
    %39 = arith.mulf %38, %32 : vector<1x128xf32>
    %40 = arith.addf %37, %39 : vector<1x128xf32>
    %41 = arith.mulf %40, %32 : vector<1x128xf32>
    %42 = arith.addf %35, %41 : vector<1x128xf32>
    %43 = math.exp %42 : vector<1x128xf32>
    %cst_16 = arith.constant -1.700000e+02 : f32
    %44 = vector.broadcast %cst_16 : f32 to vector<1x128xf32>
    %45 = arith.mulf %44, %43 : vector<1x128xf32>
    %46 = arith.addf %28, %45 : vector<1x128xf32>
    %cst_17 = arith.constant -1.000000e+00 : f32
    %47 = vector.broadcast %cst_17 : f32 to vector<1x128xf32>
    %48 = arith.subf %1, %47 : vector<1x128xf32>
    %cst_18 = arith.constant 1.000000e+00 : f32
    %49 = vector.broadcast %cst_18 : f32 to vector<1x128xf32>
    %50 = arith.subf %3, %49 : vector<1x128xf32>
    %cst_19 = arith.constant 0.699999988 : f32
    %51 = vector.broadcast %cst_19 : f32 to vector<1x128xf32>
    %52 = arith.mulf %51, %48 : vector<1x128xf32>
    %53 = arith.mulf %52, %48 : vector<1x128xf32>
    %cst_20 = arith.constant 6.000000e-01 : f32
    %54 = vector.broadcast %cst_20 : f32 to vector<1x128xf32>
    %55 = arith.mulf %54, %48 : vector<1x128xf32>
    %cst_21 = arith.constant 0.699999988 : f32
    %56 = vector.broadcast %cst_21 : f32 to vector<1x128xf32>
    %57 = arith.mulf %56, %50 : vector<1x128xf32>
    %58 = arith.addf %55, %57 : vector<1x128xf32>
    %59 = arith.mulf %58, %50 : vector<1x128xf32>
    %60 = arith.addf %53, %59 : vector<1x128xf32>
    %61 = math.exp %60 : vector<1x128xf32>
    %cst_22 = arith.constant 1.500000e+01 : f32
    %62 = vector.broadcast %cst_22 : f32 to vector<1x128xf32>
    %63 = arith.mulf %62, %61 : vector<1x128xf32>
    %64 = arith.addf %46, %63 : vector<1x128xf32>
    %c0_23 = arith.constant 0 : index
    %c0_24 = arith.constant 0 : index
    %65 = vector.load %arg2[%c0_23, %c0_24] : memref<1x128xf32, #tpu.memory_space<vmem>>, vector<1x128xf32>
    tpu.vector_store %arg2[%c0_23, %c0_24], %64 {strides = array<i32>} : memref<1x128xf32, #tpu.memory_space<vmem>>, vector<1x128xf32>,
    return
  }
  func.func @transform_0(%arg0: i32) -> (i32, i32, i32) {
    %c0_i32 = arith.constant 0 : i32
    %c0_i32_0 = arith.constant 0 : i32
    %c0_i32_1 = arith.constant 0 : i32
    return %c0_i32, %arg0, %c0_i32_0 : i32, i32, i32
  }
  func.func @transform_1(%arg0: i32) -> (i32, i32) {
    %c0_i32 = arith.constant 0 : i32
    %c0_i32_0 = arith.constant 0 : i32
    return %arg0, %c0_i32 : i32, i32
  }
}

</mosaic_0001>

<llo_original>
// kernel: tpu_custom_call.1
$region0: #{tpu_custom_call.1}
  #allocation0 [shape = 'u32[]', space=smem, size = 0x4, offset = 0x4, fixed_abs, tag = 'smem constant byte address 0x4 - core index']
  #allocation1 [shape = 'u32[144,128]{1,0:T(1,128)}', space=vmem, size = 0x12000, scoped, tag = 'internal scratch']
  %s0 = inlined_call_operand.hbm [shape: f32[2,1,128], index: 0, kind: input, shape index: {}]
  %s1 = inlined_call_operand.hbm [shape: f32[1,128], index: 1, kind: output, shape index: {}]
  %s2 = sld [smem:[#allocation0]]
  $region18: #{tpu_custom_call.1} parent=0
    _
  %s4 = ssub.s32 1, %s2
  %s5 = scalar_select 0, %s4, %s2
  $region1: #{tpu_custom_call.1} parent=0
    #allocation2 [shape = 'u8[1024]{0}', space=vmem, size = 0x400, scoped, tag = 'input window, operand 0, single buffered']
    #allocation3 [shape = 's32[1]{0}', space=sflag, size = 0x4, scoped, tag = 'scoped memory for tpu_custom_call.1']
    #allocation4 [shape = 's32[1]{0}', space=sflag, size = 0x4, scoped, tag = 'scoped memory for tpu_custom_call.1']
    #allocation5 [shape = 'u8[512]{0}', space=vmem, size = 0x400, scoped, tag = 'output window, operand 0, single buffered']
    %6 = vsyncpa [#allocation3], 0
    %7 = vsyncpa [#allocation4], 0
    // Predicated region
    $region2: #{tpu_custom_call.1} parent=1 // pred_check
      _
    $region3: #{tpu_custom_call.1} parent=1 // pred_check_branch
      %9 = sbr.rel (0) target = $region5
    $region4: #{tpu_custom_call.1} parent=1 // pred_region
      %s11 = ssub.s32 32, 32
      %12 = vsyncadd [#allocation3], %s11
      %s13 = sshll.u32 [#allocation2], 4
      %s14 = int_to_ptr.vmem [resolvable:$true] %s13
      %19 = dma.hbm_to_vmem [thread:$0]  %s0, 32, %s14, [#allocation3], 16, 16, 1
    $region5: #{tpu_custom_call.1} parent=1 // pred_fallthru
      _
    // Predicated region
    $region6: #{tpu_custom_call.1} parent=1 // pred_check
      _
    $region7: #{tpu_custom_call.1} parent=1 // pred_check_branch
      %21 = sbr.rel (0) target = $region9
    $region8: #{tpu_custom_call.1} parent=1 // pred_region
      %22 = dma.done [#allocation3], 32
    $region9: #{tpu_custom_call.1} parent=1 // pred_fallthru
      _
    %v23 = vld [vmem:[#allocation2] sm:$0x1]
    %s24 = scalar_lea.vmem [#allocation2], 1
    %v25 = vld [vmem:[%s24] sm:$0x1]
    %v26 = vsub.f32 %v23, 1.0
    %v27 = vmul.f32 %v26, -1.0
    %v28 = vmul.f32 %v27, %v26
    %v29 = vmul.f32 %v25, -10.0
    %v30 = vmul.f32 %v29, %v25
    %v31 = vadd.f32 %v28, %v30
    %v32 = vmul.f32 %v31, 1.442695
    %v33 = vpow.pop %v32
    %v34 = vmul.f32 %v33, -200.0
    %v35 = vsub.f32 %v25, 0.5
    %v36 = vmul.f32 %v23, -1.0
    %v37 = vmul.f32 %v36, %v23
    %v38 = vmul.f32 %v35, -10.0
    %v39 = vmul.f32 %v38, %v35
    %v40 = vadd.f32 %v37, %v39
    %v41 = vmul.f32 %v40, 1.442695
    %v42 = vpow.pop %v41
    %v43 = vmul.f32 %v42, -100.0
    %v44 = vadd.f32 %v34, %v43
    %v45 = vsub.f32 %v23, -0.5
    %v46 = vsub.f32 %v25, 1.5
    %v47 = vmul.f32 %v45, -6.5
    %v48 = vmul.f32 %v47, %v45
    %v49 = vmul.f32 %v45, 11.0
    %v50 = vmul.f32 %v46, -6.5
    %v51 = vadd.f32 %v49, %v50
    %v52 = vmul.f32 %v51, %v46
    %v53 = vadd.f32 %v48, %v52
    %v54 = vmul.f32 %v53, 1.442695
    %v55 = vpow.pop %v54
    %v56 = vmul.f32 %v55, -170.0
    %v57 = vadd.f32 %v44, %v56
    %v58 = vsub.f32 %v23, -1.0
    %v59 = vsub.f32 %v25, 1.0
    %v60 = vmul.f32 %v58, 0.7
    %v61 = vmul.f32 %v60, %v58
    %v62 = vmul.f32 %v58, 0.6
    %v63 = vmul.f32 %v59, 0.7
    %v64 = vadd.f32 %v62, %v63
    %v65 = vmul.f32 %v64, %v59
    %v66 = vadd.f32 %v61, %v65
    %v67 = vmul.f32 %v66, 1.442695
    %v68 = vpow.pop %v67
    %v69 = vmul.f32 %v68, 15.0
    %v70 = vadd.f32 %v57, %v69
    %71 = vst [vmem:[#allocation5] sm:$0x1] %v70
    // Predicated region
    $region10: #{tpu_custom_call.1} parent=1 // pred_check
      _
    $region11: #{tpu_custom_call.1} parent=1 // pred_check_branch
      %73 = sbr.rel (0) target = $region13
    $region12: #{tpu_custom_call.1} parent=1 // pred_region
      %s75 = ssub.s32 16, 16
      %76 = vsyncadd [#allocation4], %s75
      %s78 = sshll.u32 [#allocation5], 4
      %s79 = int_to_ptr.vmem [resolvable:$true] %s78
      %81 = dma.vmem_to_hbm [thread:$0]  %s79, 16, %s1, [#allocation4]
    $region13: #{tpu_custom_call.1} parent=1 // pred_fallthru
      _
    // Predicated region
    $region14: #{tpu_custom_call.1} parent=1 // pred_check
      _
    $region15: #{tpu_custom_call.1} parent=1 // pred_check_branch
      %83 = sbr.rel (0) target = $region17
    $region16: #{tpu_custom_call.1} parent=1 // pred_region
      %84 = dma.done [#allocation4], 16
    $region17: #{tpu_custom_call.1} parent=1 // pred_fallthru
      _
    %85 = vsyncpa [#allocation3], 1
    %86 = vsyncpa [#allocation4], 1

</llo_original>
